<compile_context>
chip_gen: v7x
topology: tpu7x:2x2x1
jax: 0.10.0
libtpu: 0.0.40
codegen_flags: <defaults>
</compile_context>

<pallas_src>
import jax
import jax.numpy as jnp
from jax.experimental import pallas as pl
from jax.experimental.pallas import tpu as pltpu

INPUT_SIZE = 3
HIDDEN_SIZE = 64
# output_size comes from len(target_encoder.classes_) (joblib-loaded label
# encoder) in the original script; hard-coded here since the kernel is
# self-contained.
OUTPUT_SIZE = 8


def _round_up(n, m):
    return ((n + m - 1) // m) * m


def _choose_tile_b(B):
    # Aim for >=4 grid steps at large B (>=2 per TensorCore on v7x megacore)
    # while keeping each step >=512 batch rows (per-step overhead
    # amortization) and the lane axis a multiple of 128.  A 4096-row tile in
    # this layout is ~0.5 MiB double-buffered, far under the scoped-VMEM
    # defaults of v5e/v6e/v7x, so no vmem_limit_bytes override is needed.
    tile = _round_up(max(pl.cdiv(B, 4), 512), 128)
    return min(tile, 4096)


def _mlp_kernel(xt_ref, w1_ref, b1_ref, w2_ref, b2_ref, o_ref):
    # Transposed layout: batch on the lane axis.
    xt = xt_ref[...]                       # (3, tile_b)
    w1 = w1_ref[...]                       # (HIDDEN, 3)  -- torch fc1.weight layout
    # fc1 (K=3): three VPU FMAs instead of a degenerate MXU matmul whose
    # contraction would be padded to 128/256 (almost all zeros).
    h = w1[:, 0:1] * xt[0:1, :]
    h = h + w1[:, 1:2] * xt[1:2, :]
    h = h + w1[:, 2:3] * xt[2:3, :]
    h = h + b1_ref[...]                    # (HIDDEN, 1) broadcasts over lanes
    h = jnp.maximum(h, 0.0)                # ReLU on the VPU
    # fc2 on the MXU: (OUT, HIDDEN) @ (HIDDEN, tile_b) -> (OUT, tile_b).
    o = jnp.dot(w2_ref[...], h, preferred_element_type=jnp.float32)
    o_ref[...] = (o + b2_ref[...]).astype(o_ref.dtype)


def prepare_params(w1, b1, w2, b2):
    """One-time (model-load) conversion to the kernel's layout.

    Takes torch nn.Linear-style params: w1 (HIDDEN, INPUT), b1 (HIDDEN,),
    w2 (OUT, HIDDEN), b2 (OUT,).  No padding or transposition of weights is
    needed for the kernel -- only the biases are reshaped to column vectors.
    """
    w1k = jnp.asarray(w1, jnp.float32)                                # (HIDDEN, INPUT)
    b1k = jnp.asarray(b1, jnp.float32).reshape(HIDDEN_SIZE, 1)        # (HIDDEN, 1)
    w2k = jnp.asarray(w2, jnp.float32)                                # (OUT, HIDDEN)
    b2k = jnp.asarray(b2, jnp.float32).reshape(OUTPUT_SIZE, 1)        # (OUT, 1)
    return w1k, b1k, w2k, b2k


def crime_model_forward(x, params, *, tile_b=None):
    """x: (B, INPUT_SIZE) f32. Returns (B, OUTPUT_SIZE) f32 logits."""
    w1k, b1k, w2k, b2k = params
    B = x.shape[0]

    tile = _choose_tile_b(B) if tile_b is None else _round_up(int(tile_b), 128)
    b_pad = _round_up(B, tile)

    # Batch on the lane axis: three contiguous length-b_pad streams instead of
    # 12-byte strided row reads.  Zero-padded batch columns are sliced off at
    # the end (they never feed a softmax/argmax here).
    xt = x.T                               # (INPUT_SIZE, B)
    if b_pad != B:
        xt = jnp.pad(xt, ((0, 0), (0, b_pad - B)))

    grid = (b_pad // tile,)

    out_t = pl.pallas_call(
        _mlp_kernel,
        out_shape=jax.ShapeDtypeStruct((OUTPUT_SIZE, b_pad), jnp.float32),
        grid_spec=pltpu.PrefetchScalarGridSpec(
            num_scalar_prefetch=0,
            grid=grid,
            in_specs=[
                pl.BlockSpec((INPUT_SIZE, tile), lambda i: (0, i)),
                pl.BlockSpec((HIDDEN_SIZE, INPUT_SIZE), lambda i: (0, 0)),
                pl.BlockSpec((HIDDEN_SIZE, 1), lambda i: (0, 0)),
                pl.BlockSpec((OUTPUT_SIZE, HIDDEN_SIZE), lambda i: (0, 0)),
                pl.BlockSpec((OUTPUT_SIZE, 1), lambda i: (0, 0)),
            ],
            out_specs=pl.BlockSpec((OUTPUT_SIZE, tile), lambda i: (0, i)),
        ),
        compiler_params=pltpu.CompilerParams(
            # Batch tiles are independent -> shard across TensorCores (v7x).
            dimension_semantics=("parallel",),
        ),
        cost_estimate=pl.CostEstimate(
            flops=2 * b_pad * (INPUT_SIZE * HIDDEN_SIZE
                               + HIDDEN_SIZE * OUTPUT_SIZE),
            transcendentals=0,
            bytes_accessed=b_pad * 4 * (INPUT_SIZE + OUTPUT_SIZE),
        ),
    )(xt, w1k, b1k, w2k, b2k)

    # Drop padded batch columns and restore the torch (batch, classes) layout.
    return out_t[:, :B].T


def init_params(key):
    """Deterministic init matching nn.Linear (uniform +/- 1/sqrt(fan_in)),
    stored in torch's native (out_features, in_features) layout."""
    k1, k2, k3, k4 = jax.random.split(key, 4)
    bound1 = 1.0 / (INPUT_SIZE ** 0.5)
    bound2 = 1.0 / (HIDDEN_SIZE ** 0.5)
    w1 = jax.random.uniform(k1, (HIDDEN_SIZE, INPUT_SIZE), jnp.float32,
                            -bound1, bound1)
    b1 = jax.random.uniform(k2, (HIDDEN_SIZE,), jnp.float32, -bound1, bound1)
    w2 = jax.random.uniform(k3, (OUTPUT_SIZE, HIDDEN_SIZE), jnp.float32,
                            -bound2, bound2)
    b2 = jax.random.uniform(k4, (OUTPUT_SIZE,), jnp.float32, -bound2, bound2)
    return w1, b1, w2, b2


def reference_forward(x, w1, b1, w2, b2):
    hp = jax.lax.Precision.HIGHEST
    h = jnp.maximum(jnp.dot(x, w1.T, precision=hp) + b1, 0.0)
    return jnp.dot(h, w2.T, precision=hp) + b2


if __name__ == "__main__":
    key = jax.random.PRNGKey(0)
    kx, kp = jax.random.split(key)
    # Non-multiple-of-tile batch to exercise batch padding + final slice.
    batch = 500
    x = jax.random.normal(kx, (batch, INPUT_SIZE), jnp.float32)
    w1, b1, w2, b2 = init_params(kp)
    params = prepare_params(w1, b1, w2, b2)

    ref = reference_forward(x, w1, b1, w2, b2)

    # Default adaptive tile (single grid step at this small batch).
    out = jax.block_until_ready(crime_model_forward(x, params))
    assert out.shape == (batch, OUTPUT_SIZE)
    assert jnp.allclose(out, ref, atol=1e-5, rtol=1e-5)

    # Explicit smaller tile to exercise a multi-step grid with padding.
    out2 = jax.block_until_ready(crime_model_forward(x, params, tile_b=256))
    assert out2.shape == (batch, OUTPUT_SIZE)
    assert jnp.allclose(out2, ref, atol=1e-5, rtol=1e-5)

    print("KERNEL_OK")
</pallas_src>

<mosaic_0001>
module attributes {stable_mosaic.version = 11 : i64} {
  func.func @_mlp_kernel(%arg0: i32, %arg1: memref<3x512xf32, #tpu.memory_space<vmem>>, %arg2: memref<64x3xf32, #tpu.memory_space<vmem>>, %arg3: memref<64x1xf32, #tpu.memory_space<vmem>>, %arg4: memref<8x64xf32, #tpu.memory_space<vmem>>, %arg5: memref<8x1xf32, #tpu.memory_space<vmem>>, %arg6: memref<8x512xf32, #tpu.memory_space<vmem>>) attributes {dimension_semantics = [#tpu.dimension_semantics<parallel>], iteration_bounds = array<i64: 1>, scalar_prefetch = 0 : i64, scratch_operands = 0 : i64, tpu.core_type = #tpu.core_type<tc>, window_params = [{transform_indices = @transform_0, window_bounds = array<i64: 3, 512>}, {pipeline_mode = #tpu.pipeline_mode<synchronous>, transform_indices = @transform_1, window_bounds = array<i64: 64, 3>}, {pipeline_mode = #tpu.pipeline_mode<synchronous>, transform_indices = @transform_2, window_bounds = array<i64: 64, 1>}, {pipeline_mode = #tpu.pipeline_mode<synchronous>, transform_indices = @transform_3, window_bounds = array<i64: 8, 64>}, {pipeline_mode = #tpu.pipeline_mode<synchronous>, transform_indices = @transform_4, window_bounds = array<i64: 8, 1>}, {transform_indices = @transform_5, window_bounds = array<i64: 8, 512>}]} {
    %c0 = arith.constant 0 : index
    %c0_0 = arith.constant 0 : index
    %0 = vector.load %arg1[%c0, %c0_0] : memref<3x512xf32, #tpu.memory_space<vmem>>, vector<3x512xf32>
    %c0_1 = arith.constant 0 : index
    %c0_2 = arith.constant 0 : index
    %1 = vector.load %arg2[%c0_1, %c0_2] : memref<64x3xf32, #tpu.memory_space<vmem>>, vector<64x3xf32>
    %2 = vector.extract_strided_slice %1 {offsets = [0, 0], sizes = [64, 1], strides = [1, 1]} : vector<64x3xf32> to vector<64x1xf32>
    %3 = vector.extract_strided_slice %0 {offsets = [0, 0], sizes = [1, 512], strides = [1, 1]} : vector<3x512xf32> to vector<1x512xf32>
    %4 = vector.broadcast %2 : vector<64x1xf32> to vector<64x512xf32>
    %5 = vector.broadcast %3 : vector<1x512xf32> to vector<64x512xf32>
    %6 = arith.mulf %4, %5 : vector<64x512xf32>
    %7 = vector.extract_strided_slice %1 {offsets = [0, 1], sizes = [64, 1], strides = [1, 1]} : vector<64x3xf32> to vector<64x1xf32>
    %8 = vector.extract_strided_slice %0 {offsets = [1, 0], sizes = [1, 512], strides = [1, 1]} : vector<3x512xf32> to vector<1x512xf32>
    %9 = vector.broadcast %7 : vector<64x1xf32> to vector<64x512xf32>
    %10 = vector.broadcast %8 : vector<1x512xf32> to vector<64x512xf32>
    %11 = arith.mulf %9, %10 : vector<64x512xf32>
    %12 = arith.addf %6, %11 : vector<64x512xf32>
    %13 = vector.extract_strided_slice %1 {offsets = [0, 2], sizes = [64, 1], strides = [1, 1]} : vector<64x3xf32> to vector<64x1xf32>
    %14 = vector.extract_strided_slice %0 {offsets = [2, 0], sizes = [1, 512], strides = [1, 1]} : vector<3x512xf32> to vector<1x512xf32>
    %15 = vector.broadcast %13 : vector<64x1xf32> to vector<64x512xf32>
    %16 = vector.broadcast %14 : vector<1x512xf32> to vector<64x512xf32>
    %17 = arith.mulf %15, %16 : vector<64x512xf32>
    %18 = arith.addf %12, %17 : vector<64x512xf32>
    %c0_3 = arith.constant 0 : index
    %c0_4 = arith.constant 0 : index
    %19 = vector.load %arg3[%c0_3, %c0_4] : memref<64x1xf32, #tpu.memory_space<vmem>>, vector<64x1xf32>
    %20 = vector.broadcast %19 : vector<64x1xf32> to vector<64x512xf32>
    %21 = arith.addf %18, %20 : vector<64x512xf32>
    %cst = arith.constant 0.000000e+00 : f32
    %22 = vector.broadcast %cst : f32 to vector<64x512xf32>
    %23 = arith.maximumf %21, %22 : vector<64x512xf32>
    %c0_5 = arith.constant 0 : index
    %c0_6 = arith.constant 0 : index
    %24 = vector.load %arg4[%c0_5, %c0_6] : memref<8x64xf32, #tpu.memory_space<vmem>>, vector<8x64xf32>
    %cst_7 = arith.constant dense<0.000000e+00> : vector<8x512xf32>
    %25 = tpu.matmul %24, %23, %cst_7 {dimension_numbers = #tpu.dot_dimension_numbers<[1], [0], [0], [1], [0, 0, 1, 1], [], []>} : vector<8x64xf32>, vector<64x512xf32>, vector<8x512xf32> -> vector<8x512xf32>
    %c0_8 = arith.constant 0 : index
    %c0_9 = arith.constant 0 : index
    %26 = vector.load %arg5[%c0_8, %c0_9] : memref<8x1xf32, #tpu.memory_space<vmem>>, vector<8x1xf32>
    %27 = vector.broadcast %26 : vector<8x1xf32> to vector<8x512xf32>
    %28 = arith.addf %25, %27 : vector<8x512xf32>
    %c0_10 = arith.constant 0 : index
    %c0_11 = arith.constant 0 : index
    %29 = vector.load %arg6[%c0_10, %c0_11] : memref<8x512xf32, #tpu.memory_space<vmem>>, vector<8x512xf32>
    tpu.vector_store %arg6[%c0_10, %c0_11], %28 {strides = array<i32>} : memref<8x512xf32, #tpu.memory_space<vmem>>, vector<8x512xf32>,
    return
  }
  func.func @transform_0(%arg0: i32) -> (i32, i32) {
    %c0_i32 = arith.constant 0 : i32
    %c0_i32_0 = arith.constant 0 : i32
    return %c0_i32, %arg0 : i32, i32
  }
  func.func @transform_1(%arg0: i32) -> (i32, i32) {
    %c0_i32 = arith.constant 0 : i32
    %c0_i32_0 = arith.constant 0 : i32
    %c0_i32_1 = arith.constant 0 : i32
    return %c0_i32, %c0_i32_0 : i32, i32
  }
  func.func @transform_2(%arg0: i32) -> (i32, i32) {
    %c0_i32 = arith.constant 0 : i32
    %c0_i32_0 = arith.constant 0 : i32
    %c0_i32_1 = arith.constant 0 : i32
    return %c0_i32, %c0_i32_0 : i32, i32
  }
  func.func @transform_3(%arg0: i32) -> (i32, i32) {
    %c0_i32 = arith.constant 0 : i32
    %c0_i32_0 = arith.constant 0 : i32
    %c0_i32_1 = arith.constant 0 : i32
    return %c0_i32, %c0_i32_0 : i32, i32
  }
  func.func @transform_4(%arg0: i32) -> (i32, i32) {
    %c0_i32 = arith.constant 0 : i32
    %c0_i32_0 = arith.constant 0 : i32
    %c0_i32_1 = arith.constant 0 : i32
    return %c0_i32, %c0_i32_0 : i32, i32
  }
  func.func @transform_5(%arg0: i32) -> (i32, i32) {
    %c0_i32 = arith.constant 0 : i32
    %c0_i32_0 = arith.constant 0 : i32
    return %c0_i32, %arg0 : i32, i32
  }
}

</mosaic_0001>

<llo_original>
// kernel: tpu_custom_call.1
$region0: #{tpu_custom_call.1}
  #allocation0 [shape = 'u32[]', space=smem, size = 0x4, offset = 0x4, fixed_abs, tag = 'smem constant byte address 0x4 - core index']
  #allocation1 [shape = 'u32[144,128]{1,0:T(1,128)}', space=vmem, size = 0x12000, scoped, tag = 'internal scratch']
  %s0 = inlined_call_operand.vmem [shape: f32[3,512], index: 0, kind: input, shape index: {}]
  %s1 = inlined_call_operand.vmem [shape: f32[64,3], index: 1, kind: input, shape index: {}]
  %s2 = inlined_call_operand.vmem [shape: f32[64,1], index: 2, kind: input, shape index: {}]
  %s3 = inlined_call_operand.vmem [shape: f32[8,64], index: 3, kind: input, shape index: {}]
  %s4 = inlined_call_operand.vmem [shape: f32[8,1], index: 4, kind: input, shape index: {}]
  %s5 = inlined_call_operand.hbm [shape: f32[8,512], index: 5, kind: output, shape index: {}]
  %s6 = sld [smem:[#allocation0]]
  $region30: #{tpu_custom_call.1} parent=0
    _
  %s8 = ssub.s32 1, %s6
  %s9 = scalar_select 0, %s8, %s6
  $region1: #{tpu_custom_call.1} parent=0
    #allocation2 [shape = 'u8[16384]{0}', space=vmem, size = 0x4000, scoped, tag = 'output window, operand 0, single buffered']
    #allocation3 [shape = 's32[1]{0}', space=sflag, size = 0x4, scoped, tag = 'scoped memory for tpu_custom_call.1']
    %10 = vsyncpa [#allocation3], 0
    // Predicated region
    $region2: #{tpu_custom_call.1} parent=1 // pred_check
      _
    $region3: #{tpu_custom_call.1} parent=1 // pred_check_branch
      %12 = sbr.rel (0) target = $region5
    $region4: #{tpu_custom_call.1} parent=1 // pred_region
      _
    $region5: #{tpu_custom_call.1} parent=1 // pred_fallthru
      _
    // Predicated region
    $region6: #{tpu_custom_call.1} parent=1 // pred_check
      _
    $region7: #{tpu_custom_call.1} parent=1 // pred_check_branch
      %14 = sbr.rel (0) target = $region9
    $region8: #{tpu_custom_call.1} parent=1 // pred_region
      _
    $region9: #{tpu_custom_call.1} parent=1 // pred_fallthru
      _
    // Predicated region
    $region10: #{tpu_custom_call.1} parent=1 // pred_check
      _
    $region11: #{tpu_custom_call.1} parent=1 // pred_check_branch
      %16 = sbr.rel (0) target = $region13
    $region12: #{tpu_custom_call.1} parent=1 // pred_region
      _
    $region13: #{tpu_custom_call.1} parent=1 // pred_fallthru
      _
    // Predicated region
    $region14: #{tpu_custom_call.1} parent=1 // pred_check
      _
    $region15: #{tpu_custom_call.1} parent=1 // pred_check_branch
      %18 = sbr.rel (0) target = $region17
    $region16: #{tpu_custom_call.1} parent=1 // pred_region
      _
    $region17: #{tpu_custom_call.1} parent=1 // pred_fallthru
      _
    // Predicated region
    $region18: #{tpu_custom_call.1} parent=1 // pred_check
      _
    $region19: #{tpu_custom_call.1} parent=1 // pred_check_branch
      %20 = sbr.rel (0) target = $region21
    $region20: #{tpu_custom_call.1} parent=1 // pred_region
      _
    $region21: #{tpu_custom_call.1} parent=1 // pred_fallthru
      _
    %v21 = vld [vmem:[%s0] sm:$0x77]
    %v22 = vld [vmem:[%s0 + $0x8] sm:$0x77]
    %v23 = vld [vmem:[%s1] sm:$0xff]
    %v24 = vld [vmem:[%s1 + $0x8] sm:$0xff]
    %v25 = vld [vmem:[%s1 + $0x10] sm:$0xff]
    %v26 = vld [vmem:[%s1 + $0x18] sm:$0xff]
    %v27 = vld [vmem:[%s1 + $0x20] sm:$0xff]
    %v28 = vld [vmem:[%s1 + $0x28] sm:$0xff]
    %v29 = vld [vmem:[%s1 + $0x30] sm:$0xff]
    %v30 = vld [vmem:[%s1 + $0x38] sm:$0xff]
    %32 = vset.pattern.permute.xlu0 0
    %33 = vperm.xlu0 %32, %v23
    %v34 = vpop.permute.xlu0 %33
    %37 = vset.pattern.permute.xlu0 0
    %38 = vperm.xlu0 %37, %v24
    %v39 = vpop.permute.xlu0 %38
    %42 = vset.pattern.permute.xlu0 0
    %43 = vperm.xlu0 %42, %v25
    %v44 = vpop.permute.xlu0 %43
    %47 = vset.pattern.permute.xlu0 0
    %48 = vperm.xlu0 %47, %v26
    %v49 = vpop.permute.xlu0 %48
    %52 = vset.pattern.permute.xlu0 0
    %53 = vperm.xlu0 %52, %v27
    %v54 = vpop.permute.xlu0 %53
    %57 = vset.pattern.permute.xlu0 0
    %58 = vperm.xlu0 %57, %v28
    %v59 = vpop.permute.xlu0 %58
    %62 = vset.pattern.permute.xlu0 0
    %63 = vperm.xlu0 %62, %v29
    %v64 = vpop.permute.xlu0 %63
    %67 = vset.pattern.permute.xlu0 0
    %68 = vperm.xlu0 %67, %v30
    %v69 = vpop.permute.xlu0 %68
    %v73 = vlaneseq
    %v74 = vshrl.u32 %v73, 7
    %v75 = vsub.s32 0, %v74
    %v76 = vrot.slane %v21, %v75
    %v77 = vlaneseq
    %v78 = vshrl.u32 %v77, 7
    %v79 = vsub.s32 4, %v78
    %v80 = vrot.slane %v21, %v79
    %v81 = vlaneseq
    %v82 = vshrl.u32 %v81, 7
    %v83 = vsub.s32 0, %v82
    %v84 = vrot.slane %v22, %v83
    %v85 = vlaneseq
    %v86 = vshrl.u32 %v85, 7
    %v87 = vsub.s32 4, %v86
    %v88 = vrot.slane %v22, %v87
    %v93 = vlaneseq
    %v94 = vshrl.u32 %v93, 7
    %v95 = vsub.s32 0, %v94
    %v96 = vrot.slane %v76, %v95
    %v97 = vlaneseq
    %v98 = vshrl.u32 %v97, 7
    %v99 = vsub.s32 0, %v98
    %v100 = vrot.slane %v80, %v99
    %v101 = vlaneseq
    %v102 = vshrl.u32 %v101, 7
    %v103 = vsub.s32 0, %v102
    %v104 = vrot.slane %v84, %v103
    %v105 = vlaneseq
    %v106 = vshrl.u32 %v105, 7
    %v107 = vsub.s32 0, %v106
    %v108 = vrot.slane %v88, %v107
    %v109 = vmul.f32 %v34, %v96
    %v110 = vmul.f32 %v34, %v100
    %v111 = vmul.f32 %v34, %v104
    %v112 = vmul.f32 %v34, %v108
    %v113 = vmul.f32 %v39, %v96
    %v114 = vmul.f32 %v39, %v100
    %v115 = vmul.f32 %v39, %v104
    %v116 = vmul.f32 %v39, %v108
    %v117 = vmul.f32 %v44, %v96
    %v118 = vmul.f32 %v44, %v100
    %v119 = vmul.f32 %v44, %v104
    %v120 = vmul.f32 %v44, %v108
    %v121 = vmul.f32 %v49, %v96
    %v122 = vmul.f32 %v49, %v100
    %v123 = vmul.f32 %v49, %v104
    %v124 = vmul.f32 %v49, %v108
    %v125 = vmul.f32 %v54, %v96
    %v126 = vmul.f32 %v54, %v100
    %v127 = vmul.f32 %v54, %v104
    %v128 = vmul.f32 %v54, %v108
    %v129 = vmul.f32 %v59, %v96
    %v130 = vmul.f32 %v59, %v100
    %v131 = vmul.f32 %v59, %v104
    %v132 = vmul.f32 %v59, %v108
    %v133 = vmul.f32 %v64, %v96
    %v134 = vmul.f32 %v64, %v100
    %v135 = vmul.f32 %v64, %v104
    %v136 = vmul.f32 %v64, %v108
    %v137 = vmul.f32 %v69, %v96
    %v138 = vmul.f32 %v69, %v100
    %v139 = vmul.f32 %v69, %v104
    %v140 = vmul.f32 %v69, %v108
    %141 = vset.pattern.permute.xlu0 1
    %142 = vperm.xlu0 %141, %v23
    %v143 = vpop.permute.xlu0 %142
    %145 = vset.pattern.permute.xlu0 1
    %146 = vperm.xlu0 %145, %v24
    %v147 = vpop.permute.xlu0 %146
    %149 = vset.pattern.permute.xlu0 1
    %150 = vperm.xlu0 %149, %v25
    %v151 = vpop.permute.xlu0 %150
    %153 = vset.pattern.permute.xlu0 1
    %154 = vperm.xlu0 %153, %v26
    %v155 = vpop.permute.xlu0 %154
    %157 = vset.pattern.permute.xlu0 1
    %158 = vperm.xlu0 %157, %v27
    %v159 = vpop.permute.xlu0 %158
    %161 = vset.pattern.permute.xlu0 1
    %162 = vperm.xlu0 %161, %v28
    %v163 = vpop.permute.xlu0 %162
    %165 = vset.pattern.permute.xlu0 1
    %166 = vperm.xlu0 %165, %v29
    %v167 = vpop.permute.xlu0 %166
    %169 = vset.pattern.permute.xlu0 1
    %170 = vperm.xlu0 %169, %v30
    %v171 = vpop.permute.xlu0 %170
    %v173 = vlaneseq
    %v174 = vshrl.u32 %v173, 7
    %v175 = vsub.s32 1, %v174
    %v176 = vrot.slane %v21, %v175
    %v177 = vlaneseq
    %v178 = vshrl.u32 %v177, 7
    %v179 = vsub.s32 5, %v178
    %v180 = vrot.slane %v21, %v179
    %v181 = vlaneseq
    %v182 = vshrl.u32 %v181, 7
    %v183 = vsub.s32 1, %v182
    %v184 = vrot.slane %v22, %v183
    %v185 = vlaneseq
    %v186 = vshrl.u32 %v185, 7
    %v187 = vsub.s32 5, %v186
    %v188 = vrot.slane %v22, %v187
    %v193 = vlaneseq
    %v194 = vshrl.u32 %v193, 7
    %v195 = vsub.s32 1, %v194
    %v196 = vrot.slane %v176, %v195
    %v197 = vlaneseq
    %v198 = vshrl.u32 %v197, 7
    %v199 = vsub.s32 1, %v198
    %v200 = vrot.slane %v180, %v199
    %v201 = vlaneseq
    %v202 = vshrl.u32 %v201, 7
    %v203 = vsub.s32 1, %v202
    %v204 = vrot.slane %v184, %v203
    %v205 = vlaneseq
    %v206 = vshrl.u32 %v205, 7
    %v207 = vsub.s32 1, %v206
    %v208 = vrot.slane %v188, %v207
    %v209 = vmul.f32 %v143, %v196
    %v210 = vmul.f32 %v143, %v200
    %v211 = vmul.f32 %v143, %v204
    %v212 = vmul.f32 %v143, %v208
    %v213 = vmul.f32 %v147, %v196
    %v214 = vmul.f32 %v147, %v200
    %v215 = vmul.f32 %v147, %v204
    %v216 = vmul.f32 %v147, %v208
    %v217 = vmul.f32 %v151, %v196
    %v218 = vmul.f32 %v151, %v200
    %v219 = vmul.f32 %v151, %v204
    %v220 = vmul.f32 %v151, %v208
    %v221 = vmul.f32 %v155, %v196
    %v222 = vmul.f32 %v155, %v200
    %v223 = vmul.f32 %v155, %v204
    %v224 = vmul.f32 %v155, %v208
    %v225 = vmul.f32 %v159, %v196
    %v226 = vmul.f32 %v159, %v200
    %v227 = vmul.f32 %v159, %v204
    %v228 = vmul.f32 %v159, %v208
    %v229 = vmul.f32 %v163, %v196
    %v230 = vmul.f32 %v163, %v200
    %v231 = vmul.f32 %v163, %v204
    %v232 = vmul.f32 %v163, %v208
    %v233 = vmul.f32 %v167, %v196
    %v234 = vmul.f32 %v167, %v200
    %v235 = vmul.f32 %v167, %v204
    %v236 = vmul.f32 %v167, %v208
    %v237 = vmul.f32 %v171, %v196
    %v238 = vmul.f32 %v171, %v200
    %v239 = vmul.f32 %v171, %v204
    %v240 = vmul.f32 %v171, %v208
    %v241 = vadd.f32 %v109, %v209
    %v242 = vadd.f32 %v110, %v210
    %v243 = vadd.f32 %v111, %v211
    %v244 = vadd.f32 %v112, %v212
    %v245 = vadd.f32 %v113, %v213
    %v246 = vadd.f32 %v114, %v214
    %v247 = vadd.f32 %v115, %v215
    %v248 = vadd.f32 %v116, %v216
    %v249 = vadd.f32 %v117, %v217
    %v250 = vadd.f32 %v118, %v218
    %v251 = vadd.f32 %v119, %v219
    %v252 = vadd.f32 %v120, %v220
    %v253 = vadd.f32 %v121, %v221
    %v254 = vadd.f32 %v122, %v222
    %v255 = vadd.f32 %v123, %v223
    %v256 = vadd.f32 %v124, %v224
    %v257 = vadd.f32 %v125, %v225
    %v258 = vadd.f32 %v126, %v226
    %v259 = vadd.f32 %v127, %v227
    %v260 = vadd.f32 %v128, %v228
    %v261 = vadd.f32 %v129, %v229
    %v262 = vadd.f32 %v130, %v230
    %v263 = vadd.f32 %v131, %v231
    %v264 = vadd.f32 %v132, %v232
    %v265 = vadd.f32 %v133, %v233
    %v266 = vadd.f32 %v134, %v234
    %v267 = vadd.f32 %v135, %v235
    %v268 = vadd.f32 %v136, %v236
    %v269 = vadd.f32 %v137, %v237
    %v270 = vadd.f32 %v138, %v238
    %v271 = vadd.f32 %v139, %v239
    %v272 = vadd.f32 %v140, %v240
    %273 = vset.pattern.permute.xlu0 2
    %274 = vperm.xlu0 %273, %v23
    %v275 = vpop.permute.xlu0 %274
    %277 = vset.pattern.permute.xlu0 2
    %278 = vperm.xlu0 %277, %v24
    %v279 = vpop.permute.xlu0 %278
    %281 = vset.pattern.permute.xlu0 2
    %282 = vperm.xlu0 %281, %v25
    %v283 = vpop.permute.xlu0 %282
    %285 = vset.pattern.permute.xlu0 2
    %286 = vperm.xlu0 %285, %v26
    %v287 = vpop.permute.xlu0 %286
    %289 = vset.pattern.permute.xlu0 2
    %290 = vperm.xlu0 %289, %v27
    %v291 = vpop.permute.xlu0 %290
    %293 = vset.pattern.permute.xlu0 2
    %294 = vperm.xlu0 %293, %v28
    %v295 = vpop.permute.xlu0 %294
    %297 = vset.pattern.permute.xlu0 2
    %298 = vperm.xlu0 %297, %v29
    %v299 = vpop.permute.xlu0 %298
    %301 = vset.pattern.permute.xlu0 2
    %302 = vperm.xlu0 %301, %v30
    %v303 = vpop.permute.xlu0 %302
    %v305 = vlaneseq
    %v306 = vshrl.u32 %v305, 7
    %v307 = vsub.s32 2, %v306
    %v308 = vrot.slane %v21, %v307
    %v309 = vlaneseq
    %v310 = vshrl.u32 %v309, 7
    %v311 = vsub.s32 6, %v310
    %v312 = vrot.slane %v21, %v311
    %v313 = vlaneseq
    %v314 = vshrl.u32 %v313, 7
    %v315 = vsub.s32 2, %v314
    %v316 = vrot.slane %v22, %v315
    %v317 = vlaneseq
    %v318 = vshrl.u32 %v317, 7
    %v319 = vsub.s32 6, %v318
    %v320 = vrot.slane %v22, %v319
    %v325 = vlaneseq
    %v326 = vshrl.u32 %v325, 7
    %v327 = vsub.s32 2, %v326
    %v328 = vrot.slane %v308, %v327
    %v329 = vlaneseq
    %v330 = vshrl.u32 %v329, 7
    %v331 = vsub.s32 2, %v330
    %v332 = vrot.slane %v312, %v331
    %v333 = vlaneseq
    %v334 = vshrl.u32 %v333, 7
    %v335 = vsub.s32 2, %v334
    %v336 = vrot.slane %v316, %v335
    %v337 = vlaneseq
    %v338 = vshrl.u32 %v337, 7
    %v339 = vsub.s32 2, %v338
    %v340 = vrot.slane %v320, %v339
    %v341 = vmul.f32 %v275, %v328
    %v342 = vmul.f32 %v275, %v332
    %v343 = vmul.f32 %v275, %v336
    %v344 = vmul.f32 %v275, %v340
    %v345 = vmul.f32 %v279, %v328
    %v346 = vmul.f32 %v279, %v332
    %v347 = vmul.f32 %v279, %v336
    %v348 = vmul.f32 %v279, %v340
    %v349 = vmul.f32 %v283, %v328
    %v350 = vmul.f32 %v283, %v332
    %v351 = vmul.f32 %v283, %v336
    %v352 = vmul.f32 %v283, %v340
    %v353 = vmul.f32 %v287, %v328
    %v354 = vmul.f32 %v287, %v332
    %v355 = vmul.f32 %v287, %v336
    %v356 = vmul.f32 %v287, %v340
    %v357 = vmul.f32 %v291, %v328
    %v358 = vmul.f32 %v291, %v332
    %v359 = vmul.f32 %v291, %v336
    %v360 = vmul.f32 %v291, %v340
    %v361 = vmul.f32 %v295, %v328
    %v362 = vmul.f32 %v295, %v332
    %v363 = vmul.f32 %v295, %v336
    %v364 = vmul.f32 %v295, %v340
    %v365 = vmul.f32 %v299, %v328
    %v366 = vmul.f32 %v299, %v332
    %v367 = vmul.f32 %v299, %v336
    %v368 = vmul.f32 %v299, %v340
    %v369 = vmul.f32 %v303, %v328
    %v370 = vmul.f32 %v303, %v332
    %v371 = vmul.f32 %v303, %v336
    %v372 = vmul.f32 %v303, %v340
    %v373 = vadd.f32 %v241, %v341
    %v374 = vadd.f32 %v242, %v342
    %v375 = vadd.f32 %v243, %v343
    %v376 = vadd.f32 %v244, %v344
    %v377 = vadd.f32 %v245, %v345
    %v378 = vadd.f32 %v246, %v346
    %v379 = vadd.f32 %v247, %v347
    %v380 = vadd.f32 %v248, %v348
    %v381 = vadd.f32 %v249, %v349
    %v382 = vadd.f32 %v250, %v350
    %v383 = vadd.f32 %v251, %v351
    %v384 = vadd.f32 %v252, %v352
    %v385 = vadd.f32 %v253, %v353
    %v386 = vadd.f32 %v254, %v354
    %v387 = vadd.f32 %v255, %v355
    %v388 = vadd.f32 %v256, %v356
    %v389 = vadd.f32 %v257, %v357
    %v390 = vadd.f32 %v258, %v358
    %v391 = vadd.f32 %v259, %v359
    %v392 = vadd.f32 %v260, %v360
    %v393 = vadd.f32 %v261, %v361
    %v394 = vadd.f32 %v262, %v362
    %v395 = vadd.f32 %v263, %v363
    %v396 = vadd.f32 %v264, %v364
    %v397 = vadd.f32 %v265, %v365
    %v398 = vadd.f32 %v266, %v366
    %v399 = vadd.f32 %v267, %v367
    %v400 = vadd.f32 %v268, %v368
    %v401 = vadd.f32 %v269, %v369
    %v402 = vadd.f32 %v270, %v370
    %v403 = vadd.f32 %v271, %v371
    %v404 = vadd.f32 %v272, %v372
    %v405 = vld [vmem:[%s2] sm:$0xff]
    %v406 = vld [vmem:[%s2 + $0x8] sm:$0xff]
    %v407 = vld [vmem:[%s2 + $0x10] sm:$0xff]
    %v408 = vld [vmem:[%s2 + $0x18] sm:$0xff]
    %v409 = vld [vmem:[%s2 + $0x20] sm:$0xff]
    %v410 = vld [vmem:[%s2 + $0x28] sm:$0xff]
    %v411 = vld [vmem:[%s2 + $0x30] sm:$0xff]
    %v412 = vld [vmem:[%s2 + $0x38] sm:$0xff]
    %414 = vset.pattern.permute.xlu0 0
    %415 = vperm.xlu0 %414, %v405
    %v416 = vpop.permute.xlu0 %415
    %419 = vset.pattern.permute.xlu0 0
    %420 = vperm.xlu0 %419, %v406
    %v421 = vpop.permute.xlu0 %420
    %424 = vset.pattern.permute.xlu0 0
    %425 = vperm.xlu0 %424, %v407
    %v426 = vpop.permute.xlu0 %425
    %429 = vset.pattern.permute.xlu0 0
    %430 = vperm.xlu0 %429, %v408
    %v431 = vpop.permute.xlu0 %430
    %434 = vset.pattern.permute.xlu0 0
    %435 = vperm.xlu0 %434, %v409
    %v436 = vpop.permute.xlu0 %435
    %439 = vset.pattern.permute.xlu0 0
    %440 = vperm.xlu0 %439, %v410
    %v441 = vpop.permute.xlu0 %440
    %444 = vset.pattern.permute.xlu0 0
    %445 = vperm.xlu0 %444, %v411
    %v446 = vpop.permute.xlu0 %445
    %449 = vset.pattern.permute.xlu0 0
    %450 = vperm.xlu0 %449, %v412
    %v451 = vpop.permute.xlu0 %450
    %v453 = vadd.f32 %v373, %v416
    %v454 = vadd.f32 %v374, %v416
    %v455 = vadd.f32 %v375, %v416
    %v456 = vadd.f32 %v376, %v416
    %v457 = vadd.f32 %v377, %v421
    %v458 = vadd.f32 %v378, %v421
    %v459 = vadd.f32 %v379, %v421
    %v460 = vadd.f32 %v380, %v421
    %v461 = vadd.f32 %v381, %v426
    %v462 = vadd.f32 %v382, %v426
    %v463 = vadd.f32 %v383, %v426
    %v464 = vadd.f32 %v384, %v426
    %v465 = vadd.f32 %v385, %v431
    %v466 = vadd.f32 %v386, %v431
    %v467 = vadd.f32 %v387, %v431
    %v468 = vadd.f32 %v388, %v431
    %v469 = vadd.f32 %v389, %v436
    %v470 = vadd.f32 %v390, %v436
    %v471 = vadd.f32 %v391, %v436
    %v472 = vadd.f32 %v392, %v436
    %v473 = vadd.f32 %v393, %v441
    %v474 = vadd.f32 %v394, %v441
    %v475 = vadd.f32 %v395, %v441
    %v476 = vadd.f32 %v396, %v441
    %v477 = vadd.f32 %v397, %v446
    %v478 = vadd.f32 %v398, %v446
    %v479 = vadd.f32 %v399, %v446
    %v480 = vadd.f32 %v400, %v446
    %v481 = vadd.f32 %v401, %v451
    %v482 = vadd.f32 %v402, %v451
    %v483 = vadd.f32 %v403, %v451
    %v484 = vadd.f32 %v404, %v451
    %v485 = vmax.f32 %v453, 0.0
    %v486 = vmax.f32 %v454, 0.0
    %v487 = vmax.f32 %v455, 0.0
    %v488 = vmax.f32 %v456, 0.0
    %v489 = vmax.f32 %v457, 0.0
    %v490 = vmax.f32 %v458, 0.0
    %v491 = vmax.f32 %v459, 0.0
    %v492 = vmax.f32 %v460, 0.0
    %v493 = vmax.f32 %v461, 0.0
    %v494 = vmax.f32 %v462, 0.0
    %v495 = vmax.f32 %v463, 0.0
    %v496 = vmax.f32 %v464, 0.0
    %v497 = vmax.f32 %v465, 0.0
    %v498 = vmax.f32 %v466, 0.0
    %v499 = vmax.f32 %v467, 0.0
    %v500 = vmax.f32 %v468, 0.0
    %v501 = vmax.f32 %v469, 0.0
    %v502 = vmax.f32 %v470, 0.0
    %v503 = vmax.f32 %v471, 0.0
    %v504 = vmax.f32 %v472, 0.0
    %v505 = vmax.f32 %v473, 0.0
    %v506 = vmax.f32 %v474, 0.0
    %v507 = vmax.f32 %v475, 0.0
    %v508 = vmax.f32 %v476, 0.0
    %v509 = vmax.f32 %v477, 0.0
    %v510 = vmax.f32 %v478, 0.0
    %v511 = vmax.f32 %v479, 0.0
    %v512 = vmax.f32 %v480, 0.0
    %v513 = vmax.f32 %v481, 0.0
    %v514 = vmax.f32 %v482, 0.0
    %v515 = vmax.f32 %v483, 0.0
    %v516 = vmax.f32 %v484, 0.0
    %v517 = vld [vmem:[%s3] sm:$0xff]
    %v518 = vld [vmem:[%s4] sm:$0xff]
    %520 = vset.pattern.permute.xlu0 0
    %521 = vperm.xlu0 %520, %v518
    %v522 = vpop.permute.xlu0 %521
    %vm524 = vcmask 523264
    %v526 = vsel %vm524, %v517, 0
    %528 = vmatprep.subr.mxu0 %v486
    %529 = vmatpush1.msra.mxu0 %v485
    %530 = vmatprep.subr.mxu0 %v490
    %531 = vmatpush1.msra.mxu0 %v489
    %532 = vmatprep.subr.mxu0 %v494
    %533 = vmatpush1.msra.mxu0 %v493
    %534 = vmatprep.subr.mxu0 %v498
    %535 = vmatpush1.msra.mxu0 %v497
    %536 = vmatprep.subr.mxu0 %v502
    %537 = vmatpush1.msra.mxu0 %v501
    %538 = vmatprep.subr.mxu0 %v506
    %539 = vmatpush1.msra.mxu0 %v505
    %540 = vmatprep.subr.mxu0 %v510
    %541 = vmatpush1.msra.mxu0 %v509
    %542 = vmatprep.subr.mxu0 %v514
    %543 = vmatpush1.msra.mxu0 %v513
    %544 = vmatprep.subr.mxu0 0.0
    %545 = vmatpush1.msra.mxu0 0.0
    %546 = vmatprep.subr.mxu0 0.0
    %547 = vmatpush1.msra.mxu0 0.0
    %548 = vmatprep.subr.mxu0 0.0
    %549 = vmatpush1.msra.mxu0 0.0
    %550 = vmatprep.subr.mxu0 0.0
    %551 = vmatpush1.msra.mxu0 0.0
    %552 = vmatprep.subr.mxu0 0.0
    %553 = vmatpush1.msra.mxu0 0.0
    %554 = vmatprep.subr.mxu0 0.0
    %555 = vmatpush1.msra.mxu0 0.0
    %556 = vmatprep.subr.mxu0 0.0
    %557 = vmatpush1.msra.mxu0 0.0
    %558 = vmatprep.subr.mxu0 0.0
    %559 = vmatpush1.msra.mxu0 0.0
    %560 = vmatprep.subr.mxu0 0.0
    %561 = vmatpush1.msra.mxu0 0.0
    %562 = vmatprep.subr.mxu0 0.0
    %563 = vmatpush1.msra.mxu0 0.0
    %564 = vmatprep.subr.mxu0 0.0
    %565 = vmatpush1.msra.mxu0 0.0
    %566 = vmatprep.subr.mxu0 0.0
    %567 = vmatpush1.msra.mxu0 0.0
    %568 = vmatprep.subr.mxu0 0.0
    %569 = vmatpush1.msra.mxu0 0.0
    %570 = vmatprep.subr.mxu0 0.0
    %571 = vmatpush1.msra.mxu0 0.0
    %572 = vmatprep.subr.mxu0 0.0
    %573 = vmatpush1.msra.mxu0 0.0
    %574 = vmatprep.subr.mxu0 0.0
    %575 = vmatpush1.msra.mxu0 0.0
    %576 = vmatprep.subr.mxu0 0.0
    %577 = vmatpush1.msra.mxu0 0.0
    %578 = vmatprep.subr.mxu0 0.0
    %579 = vmatpush1.msra.mxu0 0.0
    %580 = vmatprep.subr.mxu0 0.0
    %581 = vmatpush1.msra.mxu0 0.0
    %582 = vmatprep.subr.mxu0 0.0
    %583 = vmatpush1.msra.mxu0 0.0
    %584 = vmatprep.subr.mxu0 0.0
    %585 = vmatpush1.msra.mxu0 0.0
    %586 = vmatprep.subr.mxu0 0.0
    %587 = vmatpush1.msra.mxu0 0.0
    %588 = vmatprep.subr.mxu0 0.0
    %589 = vmatpush1.msra.mxu0 0.0
    %590 = vmatprep.subr.mxu0 0.0
    %591 = vmatpush1.msra.mxu0 0.0
    %592 = vmatprep.mubr.f32.mxu0 0.0
    %593 = vmatmul.mubr.f32.gmra.mrb[0].mxu0 %v526
    %v594 = vpop.f32.mrb[0].mxu0
    %v595 = vadd.f32 %v522, %v594
    %v596 = vpop.f32.mrb[0].mxu0
    %v597 = vadd.f32 %v522, %v596
    %598 = vdwg.mxu0
    %599 = vmatprep.subr.mxu0 %v488
    %600 = vmatpush1.msra.mxu0 %v487
    %601 = vmatprep.subr.mxu0 %v492
    %602 = vmatpush1.msra.mxu0 %v491
    %603 = vmatprep.subr.mxu0 %v496
    %604 = vmatpush1.msra.mxu0 %v495
    %605 = vmatprep.subr.mxu0 %v500
    %606 = vmatpush1.msra.mxu0 %v499
    %607 = vmatprep.subr.mxu0 %v504
    %608 = vmatpush1.msra.mxu0 %v503
    %609 = vmatprep.subr.mxu0 %v508
    %610 = vmatpush1.msra.mxu0 %v507
    %611 = vmatprep.subr.mxu0 %v512
    %612 = vmatpush1.msra.mxu0 %v511
    %613 = vmatprep.subr.mxu0 %v516
    %614 = vmatpush1.msra.mxu0 %v515
    %615 = vmatprep.subr.mxu0 0.0
    %616 = vmatpush1.msra.mxu0 0.0
    %617 = vmatprep.subr.mxu0 0.0
    %618 = vmatpush1.msra.mxu0 0.0
    %619 = vmatprep.subr.mxu0 0.0
    %620 = vmatpush1.msra.mxu0 0.0
    %621 = vmatprep.subr.mxu0 0.0
    %622 = vmatpush1.msra.mxu0 0.0
    %623 = vmatprep.subr.mxu0 0.0
    %624 = vmatpush1.msra.mxu0 0.0
    %625 = vmatprep.subr.mxu0 0.0
    %626 = vmatpush1.msra.mxu0 0.0
    %627 = vmatprep.subr.mxu0 0.0
    %628 = vmatpush1.msra.mxu0 0.0
    %629 = vmatprep.subr.mxu0 0.0
    %630 = vmatpush1.msra.mxu0 0.0
    %631 = vmatprep.subr.mxu0 0.0
    %632 = vmatpush1.msra.mxu0 0.0
    %633 = vmatprep.subr.mxu0 0.0
    %634 = vmatpush1.msra.mxu0 0.0
    %635 = vmatprep.subr.mxu0 0.0
    %636 = vmatpush1.msra.mxu0 0.0
    %637 = vmatprep.subr.mxu0 0.0
    %638 = vmatpush1.msra.mxu0 0.0
    %639 = vmatprep.subr.mxu0 0.0
    %640 = vmatpush1.msra.mxu0 0.0
    %641 = vmatprep.subr.mxu0 0.0
    %642 = vmatpush1.msra.mxu0 0.0
    %643 = vmatprep.subr.mxu0 0.0
    %644 = vmatpush1.msra.mxu0 0.0
    %645 = vmatprep.subr.mxu0 0.0
    %646 = vmatpush1.msra.mxu0 0.0
    %647 = vmatprep.subr.mxu0 0.0
    %648 = vmatpush1.msra.mxu0 0.0
    %649 = vmatprep.subr.mxu0 0.0
    %650 = vmatpush1.msra.mxu0 0.0
    %651 = vmatprep.subr.mxu0 0.0
    %652 = vmatpush1.msra.mxu0 0.0
    %653 = vmatprep.subr.mxu0 0.0
    %654 = vmatpush1.msra.mxu0 0.0
    %655 = vmatprep.subr.mxu0 0.0
    %656 = vmatpush1.msra.mxu0 0.0
    %657 = vmatprep.subr.mxu0 0.0
    %658 = vmatpush1.msra.mxu0 0.0
    %659 = vmatprep.subr.mxu0 0.0
    %660 = vmatpush1.msra.mxu0 0.0
    %661 = vmatprep.subr.mxu0 0.0
    %662 = vmatpush1.msra.mxu0 0.0
    %663 = vmatprep.mubr.f32.mxu0 0.0
    %664 = vmatmul.mubr.f32.gmra.mrb[0].mxu0 %v526
    %v665 = vpop.f32.mrb[0].mxu0
    %v666 = vadd.f32 %v522, %v665
    %v667 = vpop.f32.mrb[0].mxu0
    %v668 = vadd.f32 %v522, %v667
    %669 = vdwg.mxu0
    %670 = vst [vmem:[#allocation2] sm:$0xff] %v595
    %671 = vst [vmem:[#allocation2 + $0x8] sm:$0xff] %v597
    %672 = vst [vmem:[#allocation2 + $0x10] sm:$0xff] %v666
    %673 = vst [vmem:[#allocation2 + $0x18] sm:$0xff] %v668
    // Predicated region
    $region22: #{tpu_custom_call.1} parent=1 // pred_check
      _
    $region23: #{tpu_custom_call.1} parent=1 // pred_check_branch
      %675 = sbr.rel (0) target = $region25
    $region24: #{tpu_custom_call.1} parent=1 // pred_region
      %s677 = ssub.s32 512, 512
      %678 = vsyncadd [#allocation3], %s677
      %s680 = sshll.u32 [#allocation2], 4
      %s681 = int_to_ptr.vmem [resolvable:$true] %s680
      %683 = dma.vmem_to_hbm [thread:$0]  %s681, 512, %s5, [#allocation3]
    $region25: #{tpu_custom_call.1} parent=1 // pred_fallthru
      _
    // Predicated region
    $region26: #{tpu_custom_call.1} parent=1 // pred_check
      _
    $region27: #{tpu_custom_call.1} parent=1 // pred_check_branch
      %685 = sbr.rel (0) target = $region29
    $region28: #{tpu_custom_call.1} parent=1 // pred_region
      %686 = dma.done [#allocation3], 512
    $region29: #{tpu_custom_call.1} parent=1 // pred_fallthru
      _
    %687 = vsyncpa [#allocation3], 1

</llo_original>
